<compile_context>
chip_gen: v7x
topology: tpu7x:2x2x1
jax: 0.10.0
libtpu: 0.0.40
codegen_flags: <defaults>
</compile_context>

<pallas_src>
import jax
import jax.numpy as jnp
from jax.experimental import pallas as pl
from jax.experimental.pallas import tpu as pltpu

_MiB = 1024 * 1024
_LANE_TARGET = 2048            # lane-dense tile target (multiple of 128)
_BLOCK_TARGET = 2 * _MiB       # per-array block size target
_MIN_BLOCK = 256 * 1024        # stop fragmenting below this once >=2 steps
_MIN_STEPS = 4                 # want >=4 pipelined grid steps when possible


# ------------------------------ helpers ------------------------------------


def _cdiv(a: int, b: int) -> int:
    return -(-a // b)


def _round_up(x: int, m: int) -> int:
    return _cdiv(x, m) * m


def _sublane_pack(dtype) -> int:
    # rows per packed sublane group: f32 -> 8, bf16/f16 -> 16, int8/fp8 -> 32
    return max(8, 32 // jnp.dtype(dtype).itemsize)


_VMEM_CACHE = []


def _chip_vmem_bytes():
    if _VMEM_CACHE:
        return _VMEM_CACHE[0]
    vmem = None
    try:
        info = pltpu.get_tpu_info()
        for attr in ("vmem_capacity_bytes", "vmem_bytes", "vmem_size_bytes"):
            v = getattr(info, attr, None)
            if v:
                vmem = int(v)
                break
    except Exception:
        vmem = None
    _VMEM_CACHE.append(vmem)
    return vmem


def _vmem_budget_and_limit():
    """Per-generation (working-set budget, scoped-VMEM limit)."""
    vmem = _chip_vmem_bytes()
    if vmem is None:
        return 16 * _MiB, 32 * _MiB            # safe everywhere
    if vmem >= 128 * _MiB:                     # v5e / v6e: 128 MiB physical
        return 48 * _MiB, 96 * _MiB
    # v7x-class parts (64 MiB per TensorCore): stay conservative
    budget = min(24 * _MiB, max(8 * _MiB, vmem // 3))
    limit = min(40 * _MiB, max(16 * _MiB, (vmem * 5) // 8))
    return budget, limit


def _balanced_tile(total: int, target: int, align: int) -> int:
    """Tile <= target that is a multiple of `align` (or == total), chosen as a
    near-divisor of `total` so the last tile is not badly ragged."""
    if total <= target:
        return total                           # full dim is always legal
    n = _cdiv(total, target)
    return max(align, _round_up(_cdiv(total, n), align))


def _pick_tiles_2d(rows, lanes, itemsize, per_block_bytes, row_align):
    """Pick (row_tile, lane_tile) for a (rows, lanes) array.

    Tiles are aligned (row_align, 128) or full-dim, balanced (near-divisors),
    sized toward min(_BLOCK_TARGET, per_block_bytes) per array, then split
    until the grid has >= _MIN_STEPS steps (>=2 once blocks are small)."""
    target_bytes = max(row_align * 128 * itemsize,
                       min(_BLOCK_TARGET, per_block_bytes))

    lane_cap = max(128, (per_block_bytes // (row_align * itemsize)) // 128 * 128)
    thw = _balanced_tile(lanes, min(_LANE_TARGET, lane_cap), 128)

    row_target = max(row_align,
                     (target_bytes // (thw * itemsize)) // row_align * row_align)
    tr = _balanced_tile(rows, row_target, row_align)

    def nsteps(a, b):
        return _cdiv(rows, a) * _cdiv(lanes, b)

    while nsteps(tr, thw) < _MIN_STEPS:
        if tr * thw * itemsize <= _MIN_BLOCK and nsteps(tr, thw) >= 2:
            break
        new_tr = tr
        if tr > row_align:                      # prefer splitting rows (keeps
            new_tr = max(row_align,             # the output lane-dense)
                         _round_up(_cdiv(rows, _cdiv(rows, tr) + 1), row_align))
        if new_tr != tr:
            tr = new_tr
            continue
        new_thw = thw
        if thw > 128:
            new_thw = max(128, _round_up(_cdiv(lanes, _cdiv(lanes, thw) + 1), 128))
        if new_thw != thw:
            thw = new_thw
            continue
        break
    return tr, thw


# ------------------------------- kernels ----------------------------------


def _make_cat_kernel(channels, offsets):
    """Copy each input tile into its (sublane-aligned) channel slice of out."""

    def kernel(*refs):
        in_refs, out_ref = refs[:-1], refs[-1]
        for r, c, o in zip(in_refs, channels, offsets):
            # static, sublane-aligned channel-slice store; cast rides the VPU
            out_ref[o:o + c, :] = r[...].astype(out_ref.dtype)

    return kernel


def _add_kernel(*refs):
    in_refs, out_ref = refs[:-1], refs[-1]
    acc = in_refs[0][...].astype(out_ref.dtype)
    for r in in_refs[1:]:
        acc = acc + r[...].astype(out_ref.dtype)   # short VPU chain, hidden under DMA
    out_ref[...] = acc


# ------------------------------ wrappers -----------------------------------


def _merge_cat(features):
    N, _, H, W = features[0].shape
    for f in features:
        assert f.shape[0] == N and f.shape[2:] == (H, W)
    HW = H * W
    out_dtype = jnp.result_type(*[f.dtype for f in features])
    out_itemsize = jnp.dtype(out_dtype).itemsize
    # Keep original dtypes; any cast happens inside the kernel.
    feats = [f.reshape(f.shape[0], f.shape[1], HW) for f in features]
    channels = [f.shape[1] for f in feats]
    c_total = sum(channels)

    offsets, off = [], 0
    for c in channels:
        offsets.append(off)
        off += c

    pack = _sublane_pack(out_dtype)
    if any(o % pack for o in offsets):
        # Unaligned channel offsets would force masked partial-sublane stores
        # and cross-sublane relayouts; a pure HBM<->HBM concatenate is faster
        # for this zero-compute op and bit-exact.
        # TODO(synk): no efficient Pallas path for sublane-unaligned concat
        # (a manual HBM->HBM DMA kernel could cover it).
        out = jnp.concatenate([f.astype(out_dtype) for f in feats], axis=1)
        return out.reshape(N, c_total, H, W)

    budget, vmem_limit = _vmem_budget_and_limit()
    in_bytes_per_lane = sum(c * jnp.dtype(f.dtype).itemsize
                            for c, f in zip(channels, feats))
    per_lane = 2 * (in_bytes_per_lane + c_total * out_itemsize)  # double-buffered
    lane_cap = max(128, (budget // per_lane) // 128 * 128)
    thw = _balanced_tile(HW, min(_LANE_TARGET, lane_cap), 128)

    # Grid-awareness: enough lane tiles for pipelining / megacore sharding.
    while N * _cdiv(HW, thw) < _MIN_STEPS and thw > 128:
        if (c_total * thw * out_itemsize <= _MIN_BLOCK
                and N * _cdiv(HW, thw) >= 2):
            break
        new = max(128, _round_up(_cdiv(HW, _cdiv(HW, thw) + 1), 128))
        if new == thw:
            break
        thw = new

    grid = (N, _cdiv(HW, thw))
    in_bytes = sum(N * c * HW * jnp.dtype(f.dtype).itemsize
                   for c, f in zip(channels, feats))
    total_bytes = int(in_bytes + N * c_total * HW * out_itemsize)

    out = pl.pallas_call(
        _make_cat_kernel(tuple(channels), tuple(offsets)),
        out_shape=jax.ShapeDtypeStruct((N, c_total, HW), out_dtype),
        grid=grid,
        in_specs=[pl.BlockSpec((None, c, thw), lambda n, s: (n, 0, s))
                  for c in channels],
        out_specs=pl.BlockSpec((None, c_total, thw), lambda n, s: (n, 0, s)),
        compiler_params=pltpu.CompilerParams(
            dimension_semantics=("parallel", "parallel"),
            vmem_limit_bytes=vmem_limit),
        cost_estimate=pl.CostEstimate(flops=0, transcendentals=0,
                                      bytes_accessed=total_bytes),
    )(*feats)
    return out.reshape(N, c_total, H, W)


def _merge_add(features):
    shape = features[0].shape
    for f in features:
        assert f.shape == shape, "'add' merge requires equal feature shapes"
    N, C, H, W = shape
    HW, R = H * W, N * C
    out_dtype = jnp.result_type(*[f.dtype for f in features])
    out_itemsize = jnp.dtype(out_dtype).itemsize
    # Keep original dtypes; the cast rides the VPU inside the kernel.
    feats = [f.reshape(R, HW) for f in features]
    k = len(feats)

    budget, vmem_limit = _vmem_budget_and_limit()
    # Per-array block budget assuming double buffering of k inputs + 1 output.
    per_block = max(8 * 128 * out_itemsize, budget // (2 * (k + 1)))
    row_align = max([_sublane_pack(out_dtype)]
                    + [_sublane_pack(f.dtype) for f in features])
    tr, thw = _pick_tiles_2d(R, HW, out_itemsize, per_block, row_align)

    grid = (_cdiv(R, tr), _cdiv(HW, thw))
    steps = grid[0] * grid[1]
    block_bytes = tr * thw * out_itemsize
    # Deeper input buffering hides DMA-issue latency for small blocks.
    buffer_count = 3 if (block_bytes < 512 * 1024 and steps >= 3) else 2

    in_bytes = sum(R * HW * jnp.dtype(f.dtype).itemsize for f in features)
    cost = pl.CostEstimate(flops=(k - 1) * R * HW, transcendentals=0,
                           bytes_accessed=int(in_bytes + R * HW * out_itemsize))

    def _call(nbuf):
        if nbuf > 2:
            in_specs = [pl.BlockSpec((tr, thw), lambda i, j: (i, j),
                                     pipeline_mode=pl.Buffered(nbuf))
                        for _ in feats]
        else:
            in_specs = [pl.BlockSpec((tr, thw), lambda i, j: (i, j))
                        for _ in feats]
        return pl.pallas_call(
            _add_kernel,
            out_shape=jax.ShapeDtypeStruct((R, HW), out_dtype),
            grid=grid,
            in_specs=in_specs,
            out_specs=pl.BlockSpec((tr, thw), lambda i, j: (i, j)),
            compiler_params=pltpu.CompilerParams(
                dimension_semantics=("parallel", "parallel"),
                vmem_limit_bytes=vmem_limit),
            cost_estimate=cost,
        )(*feats)

    if buffer_count > 2:
        try:
            out = _call(buffer_count)
        except Exception:
            # pipeline_mode not supported here -> default double buffering
            out = _call(2)
    else:
        out = _call(2)
    return out.reshape(N, C, H, W)


def unet3p_merge(features, merge_policy: str = "cat"):
    """Pallas implementation of Unet3pMergeBlock.forward (NCHW inputs)."""
    assert merge_policy in ("cat", "add"), f"merge_policy not in {('cat', 'add')}"
    features = list(features)
    if merge_policy == "cat":
        return _merge_cat(features)
    # TODO(synk): torch.sum(features) on a tuple of tensors would raise in
    # PyTorch; we implement the intended elementwise sum of the feature maps.
    return _merge_add(features)


if __name__ == "__main__":
    key = jax.random.PRNGKey(0)
    k1, k2, k3, k4, k5 = jax.random.split(key, 5)
    N, H, W = 2, 16, 16

    # 'cat' merge: different channel widths, sublane-aligned offsets -> Pallas path
    f1 = jax.random.normal(k1, (N, 8, H, W), dtype=jnp.float32)
    f2 = jax.random.normal(k2, (N, 16, H, W), dtype=jnp.float32)
    f3 = jax.random.normal(k3, (N, 8, H, W), dtype=jnp.float32)
    out_cat = unet3p_merge([f1, f2, f3], merge_policy="cat")
    jax.block_until_ready(out_cat)
    ref_cat = jnp.concatenate([f1, f2, f3], axis=1)
    assert out_cat.shape == (N, 32, H, W), out_cat.shape
    assert jnp.array_equal(out_cat, ref_cat), "cat mismatch"

    # 'cat' with unaligned channel offsets (4,4,4) exercises the XLA fallback
    g1, g2, g3 = f1[:, :4], f2[:, :4], f3[:, :4]
    out_cat2 = unet3p_merge([g1, g2, g3], merge_policy="cat")
    jax.block_until_ready(out_cat2)
    assert jnp.array_equal(out_cat2, jnp.concatenate([g1, g2, g3], axis=1)), \
        "cat (unaligned) mismatch"

    # 'add' merge
    a1 = jax.random.normal(k4, (N, 8, H, W), dtype=jnp.float32)
    out_add = unet3p_merge([a1, f1, f3], merge_policy="add")
    jax.block_until_ready(out_add)
    assert out_add.shape == (N, 8, H, W), out_add.shape
    assert jnp.allclose(out_add, a1 + f1 + f3), "add mismatch"

    # 'add' with mixed dtypes (bf16 skip + f32): exercises the in-kernel cast
    b1 = a1.astype(jnp.bfloat16)
    out_mix = unet3p_merge([b1, f1], merge_policy="add")
    jax.block_until_ready(out_mix)
    ref_mix = b1.astype(jnp.float32) + f1
    assert out_mix.dtype == jnp.float32
    assert jnp.allclose(out_mix, ref_mix, atol=1e-6), "mixed-dtype add mismatch"

    # 'add' on a non-power-of-two spatial size (56x56): exercises balanced
    # (ragged-aware) lane tiling and the small-block deeper-buffered path.
    h1 = jax.random.normal(k5, (N, 32, 56, 56), dtype=jnp.float32)
    h2 = h1 * 0.5
    h3 = -h1
    out_big = unet3p_merge([h1, h2, h3], merge_policy="add")
    jax.block_until_ready(out_big)
    assert jnp.allclose(out_big, h1 + h2 + h3, atol=1e-5), "add (56x56) mismatch"

    print("KERNEL_OK")
</pallas_src>

<mosaic_0001>
module attributes {stable_mosaic.version = 11 : i64} {
  func.func @kernel(%arg0: i32, %arg1: i32, %arg2: memref<1x8x256xf32, #tpu.memory_space<vmem>>, %arg3: memref<1x16x256xf32, #tpu.memory_space<vmem>>, %arg4: memref<1x8x256xf32, #tpu.memory_space<vmem>>, %arg5: memref<1x32x256xf32, #tpu.memory_space<vmem>>) attributes {dimension_semantics = [#tpu.dimension_semantics<parallel>, #tpu.dimension_semantics<parallel>], iteration_bounds = array<i64: 2, 1>, scalar_prefetch = 0 : i64, scratch_operands = 0 : i64, tpu.core_type = #tpu.core_type<tc>, window_params = [{transform_indices = @transform_0, window_bounds = array<i64: 1, 8, 256>}, {transform_indices = @transform_1, window_bounds = array<i64: 1, 16, 256>}, {transform_indices = @transform_2, window_bounds = array<i64: 1, 8, 256>}, {transform_indices = @transform_3, window_bounds = array<i64: 1, 32, 256>}]} {
    %c0 = arith.constant 0 : index
    %c0_0 = arith.constant 0 : index
    %c0_1 = arith.constant 0 : index
    %0 = vector.load %arg2[%c0, %c0_0, %c0_1] : memref<1x8x256xf32, #tpu.memory_space<vmem>>, vector<1x8x256xf32>
    %1 = vector.shape_cast %0 : vector<1x8x256xf32> to vector<8x256xf32>
    %c0_2 = arith.constant 0 : index
    %c0_3 = arith.constant 0 : index
    %c0_4 = arith.constant 0 : index
    %2 = vector.load %arg5[%c0_2, %c0_3, %c0_4] : memref<1x32x256xf32, #tpu.memory_space<vmem>>, vector<1x8x256xf32>
    %3 = vector.shape_cast %2 : vector<1x8x256xf32> to vector<8x256xf32>
    %4 = vector.shape_cast %1 : vector<8x256xf32> to vector<1x8x256xf32>
    tpu.vector_store %arg5[%c0_2, %c0_3, %c0_4], %4 {strides = array<i32>} : memref<1x32x256xf32, #tpu.memory_space<vmem>>, vector<1x8x256xf32>,
    %c0_5 = arith.constant 0 : index
    %c0_6 = arith.constant 0 : index
    %c0_7 = arith.constant 0 : index
    %5 = vector.load %arg3[%c0_5, %c0_6, %c0_7] : memref<1x16x256xf32, #tpu.memory_space<vmem>>, vector<1x16x256xf32>
    %6 = vector.shape_cast %5 : vector<1x16x256xf32> to vector<16x256xf32>
    %c0_8 = arith.constant 0 : index
    %c8 = arith.constant 8 : index
    %c0_9 = arith.constant 0 : index
    %7 = vector.load %arg5[%c0_8, %c8, %c0_9] : memref<1x32x256xf32, #tpu.memory_space<vmem>>, vector<1x16x256xf32>
    %8 = vector.shape_cast %7 : vector<1x16x256xf32> to vector<16x256xf32>
    %9 = vector.shape_cast %6 : vector<16x256xf32> to vector<1x16x256xf32>
    tpu.vector_store %arg5[%c0_8, %c8, %c0_9], %9 {strides = array<i32>} : memref<1x32x256xf32, #tpu.memory_space<vmem>>, vector<1x16x256xf32>,
    %c0_10 = arith.constant 0 : index
    %c0_11 = arith.constant 0 : index
    %c0_12 = arith.constant 0 : index
    %10 = vector.load %arg4[%c0_10, %c0_11, %c0_12] : memref<1x8x256xf32, #tpu.memory_space<vmem>>, vector<1x8x256xf32>
    %11 = vector.shape_cast %10 : vector<1x8x256xf32> to vector<8x256xf32>
    %c0_13 = arith.constant 0 : index
    %c24 = arith.constant 24 : index
    %c0_14 = arith.constant 0 : index
    %12 = vector.load %arg5[%c0_13, %c24, %c0_14] : memref<1x32x256xf32, #tpu.memory_space<vmem>>, vector<1x8x256xf32>
    %13 = vector.shape_cast %12 : vector<1x8x256xf32> to vector<8x256xf32>
    %14 = vector.shape_cast %11 : vector<8x256xf32> to vector<1x8x256xf32>
    tpu.vector_store %arg5[%c0_13, %c24, %c0_14], %14 {strides = array<i32>} : memref<1x32x256xf32, #tpu.memory_space<vmem>>, vector<1x8x256xf32>,
    return
  }
  func.func @transform_0(%arg0: i32, %arg1: i32) -> (i32, i32, i32) {
    %c0_i32 = arith.constant 0 : i32
    %c0_i32_0 = arith.constant 0 : i32
    return %arg0, %c0_i32, %arg1 : i32, i32, i32
  }
  func.func @transform_1(%arg0: i32, %arg1: i32) -> (i32, i32, i32) {
    %c0_i32 = arith.constant 0 : i32
    %c0_i32_0 = arith.constant 0 : i32
    return %arg0, %c0_i32, %arg1 : i32, i32, i32
  }
  func.func @transform_2(%arg0: i32, %arg1: i32) -> (i32, i32, i32) {
    %c0_i32 = arith.constant 0 : i32
    %c0_i32_0 = arith.constant 0 : i32
    return %arg0, %c0_i32, %arg1 : i32, i32, i32
  }
  func.func @transform_3(%arg0: i32, %arg1: i32) -> (i32, i32, i32) {
    %c0_i32 = arith.constant 0 : i32
    %c0_i32_0 = arith.constant 0 : i32
    return %arg0, %c0_i32, %arg1 : i32, i32, i32
  }
}

</mosaic_0001>

<llo_original>
// kernel: tpu_custom_call.1
$region0: #{tpu_custom_call.1}
  #allocation0 [shape = 'u32[]', space=smem, size = 0x4, offset = 0x4, fixed_abs, tag = 'smem constant byte address 0x4 - core index']
  #allocation1 [shape = 'u32[144,128]{1,0:T(1,128)}', space=vmem, size = 0x12000, scoped, tag = 'internal scratch']
  %s0 = inlined_call_operand.hbm [shape: f32[2,8,256], index: 0, kind: input, shape index: {}]
  %s1 = inlined_call_operand.hbm [shape: f32[2,16,256], index: 1, kind: input, shape index: {}]
  %s2 = inlined_call_operand.hbm [shape: f32[2,8,256], index: 2, kind: input, shape index: {}]
  %s3 = inlined_call_operand.hbm [shape: f32[2,32,256], index: 3, kind: output, shape index: {}]
  %s4 = sld [smem:[#allocation0]]
  $region57: #{tpu_custom_call.1} parent=0
    _
  %s6 = ssub.s32 1, %s4
  %s7 = scalar_select 0, %s6, %s4
  $region1: #{tpu_custom_call.1} parent=0
    #allocation2 [shape = 'u8[16384]{0}', space=vmem, size = 0x4000, scoped, tag = 'input window, operand 0']
    #allocation3 [shape = 's32[2]{0}', space=sflag, size = 0x8, scoped, tag = 'scoped memory for tpu_custom_call.1']
    #allocation4 [shape = 's32[2]{0}', space=sflag, size = 0x8, scoped, tag = 'scoped memory for tpu_custom_call.1']
    #allocation5 [shape = 'u8[32768]{0}', space=vmem, size = 0x8000, scoped, tag = 'input window, operand 1']
    #allocation6 [shape = 's32[2]{0}', space=sflag, size = 0x8, scoped, tag = 'scoped memory for tpu_custom_call.1']
    #allocation7 [shape = 'u8[16384]{0}', space=vmem, size = 0x4000, scoped, tag = 'input window, operand 2']
    #allocation8 [shape = 'u8[65536]{0}', space=vmem, size = 0x10000, scoped, tag = 'output window, operand 0']
    %8 = vsyncpa [#allocation3], 0
    %s9 = scalar_lea.sflag [#allocation3], 1
    %10 = vsyncpa %s9, 0
    %11 = vsyncpa [#allocation6], 0
    %s12 = scalar_lea.sflag [#allocation6], 1
    %13 = vsyncpa %s12, 0
    %14 = vsyncpa [#allocation4], 0
    %s15 = scalar_lea.sflag [#allocation4], 1
    %16 = vsyncpa %s15, 0
    loop: start=0, step=1, limit=4
    $region2: #{tpu_custom_call.1} parent=1 // loop_pre_header
      _
    $region3: #{tpu_custom_call.1} parent=1 // loop_header
      %s18 = sphi 0, %s22
      %p19 = scmp.ge.s32.totalorder %s18, 4
      %s25 = sphi 0, %s37
      %s26 = sphi 0, %s33
      %s27 = sphi 0, %s25
      %s28 = sphi 0, %s26
      %s29 = sphi 0, %s27
      %s30 = sphi 0, %s28
      %s42 = sphi 0, %s44
      %s45 = sphi 0, %s42
      %s46 = sphi 0, %s45
      %s62 = sphi 0, %s46
      %s70 = sphi 0, %s72
      %s73 = sphi 0, %s70
      %s74 = sphi 0, %s73
      %s90 = sphi 0, %s74
      %s98 = sphi 0, %s100
      %s101 = sphi 0, %s98
      %s102 = sphi 0, %s101
      %s118 = sphi 0, %s102
      %s126 = sphi 0, %s128
      %s129 = sphi 0, %s126
      %s130 = sphi 0, %s129
      %s146 = sphi 0, %s130
    $region4: #{tpu_custom_call.1} parent=1 // loop_header_branch
      %21 = sbr.rel (%p19) target = $region8
    $region5: #{tpu_custom_call.1} parent=1 // loop_body
      %s23 = ssub.s32 %s18, 1
      %s24 = ssub.s32 %s18, 2
      %s31 = sadd.s32 1, %s26
      %p32 = scmp.ge.s32.totalorder %s31, 1
      %s33 = scalar_select %p32, 0, %s31
      %s34 = sadd.s32 1, %s25
      %s35 = scalar_select %p32, %s34, %s25
      %p36 = scmp.ge.s32.totalorder %s35, 2
      %s37 = scalar_select %p36, 0, %s35
      %s38 = ssub.s32 %s25, %s37
      %s39 = ssub.s32 %s26, %s33
      %s40 = sor.u32 %s38, %s39
      %p41 = scmp.eq.s32.totalorder %s40, 0
      %s43 = sadd.s32 %s42, 1
      %s44 = scalar_select %p41, %s42, %s43
      %p47 = pneg %p41
      %p48 = scmp.eq.s32.totalorder %s18, 1
      %p49 = por %p47, %p48
      %p50 = scmp.ne.s32.totalorder %s42, %s45
      %p51 = scmp.eq.s32.totalorder %s18, 0
      %p52 = por %p50, %p51
      %p53 = scmp.ne.s32.totalorder %s42, %s45
      %p54 = scmp.eq.s32.totalorder %s23, 1
      %p55 = por %p53, %p54
      %p56 = scmp.ne.s32.totalorder %s45, %s46
      %p57 = scmp.eq.s32.totalorder %s23, 0
      %p58 = por %p56, %p57
      %p59 = scmp.ne.s32.totalorder %s45, %s46
      %p60 = scmp.eq.s32.totalorder %s24, 1
      %p61 = por %p59, %p60
      %p63 = scmp.ne.s32.totalorder %s46, %s62
      %p64 = scmp.eq.s32.totalorder %s24, 0
      %p65 = por %p63, %p64
      %s66 = ssub.s32 %s25, %s37
      %s67 = ssub.s32 %s26, %s33
      %s68 = sor.u32 %s66, %s67
      %p69 = scmp.eq.s32.totalorder %s68, 0
      %s71 = sadd.s32 %s70, 1
      %s72 = scalar_select %p69, %s70, %s71
      %p75 = pneg %p69
      %p76 = scmp.eq.s32.totalorder %s18, 1
      %p77 = por %p75, %p76
      %p78 = scmp.ne.s32.totalorder %s70, %s73
      %p79 = scmp.eq.s32.totalorder %s18, 0
      %p80 = por %p78, %p79
      %p81 = scmp.ne.s32.totalorder %s70, %s73
      %p82 = scmp.eq.s32.totalorder %s23, 1
      %p83 = por %p81, %p82
      %p84 = scmp.ne.s32.totalorder %s73, %s74
      %p85 = scmp.eq.s32.totalorder %s23, 0
      %p86 = por %p84, %p85
      %p87 = scmp.ne.s32.totalorder %s73, %s74
      %p88 = scmp.eq.s32.totalorder %s24, 1
      %p89 = por %p87, %p88
      %p91 = scmp.ne.s32.totalorder %s74, %s90
      %p92 = scmp.eq.s32.totalorder %s24, 0
      %p93 = por %p91, %p92
      %s94 = ssub.s32 %s25, %s37
      %s95 = ssub.s32 %s26, %s33
      %s96 = sor.u32 %s94, %s95
      %p97 = scmp.eq.s32.totalorder %s96, 0
      %s99 = sadd.s32 %s98, 1
      %s100 = scalar_select %p97, %s98, %s99
      %p103 = pneg %p97
      %p104 = scmp.eq.s32.totalorder %s18, 1
      %p105 = por %p103, %p104
      %p106 = scmp.ne.s32.totalorder %s98, %s101
      %p107 = scmp.eq.s32.totalorder %s18, 0
      %p108 = por %p106, %p107
      %p109 = scmp.ne.s32.totalorder %s98, %s101
      %p110 = scmp.eq.s32.totalorder %s23, 1
      %p111 = por %p109, %p110
      %p112 = scmp.ne.s32.totalorder %s101, %s102
      %p113 = scmp.eq.s32.totalorder %s23, 0
      %p114 = por %p112, %p113
      %p115 = scmp.ne.s32.totalorder %s101, %s102
      %p116 = scmp.eq.s32.totalorder %s24, 1
      %p117 = por %p115, %p116
      %p119 = scmp.ne.s32.totalorder %s102, %s118
      %p120 = scmp.eq.s32.totalorder %s24, 0
      %p121 = por %p119, %p120
      %s122 = ssub.s32 %s25, %s37
      %s123 = ssub.s32 %s26, %s33
      %s124 = sor.u32 %s122, %s123
      %p125 = scmp.eq.s32.totalorder %s124, 0
      %s127 = sadd.s32 %s126, 1
      %s128 = scalar_select %p125, %s126, %s127
      %p131 = pneg %p125
      %p132 = scmp.eq.s32.totalorder %s18, 1
      %p133 = por %p131, %p132
      %p134 = scmp.ne.s32.totalorder %s126, %s129
      %p135 = scmp.eq.s32.totalorder %s18, 0
      %p136 = por %p134, %p135
      %p137 = scmp.ne.s32.totalorder %s126, %s129
      %p138 = scmp.eq.s32.totalorder %s23, 1
      %p139 = por %p137, %p138
      %p140 = scmp.ne.s32.totalorder %s129, %s130
      %p141 = scmp.eq.s32.totalorder %s23, 0
      %p142 = por %p140, %p141
      %p143 = scmp.ne.s32.totalorder %s129, %s130
      %p144 = scmp.eq.s32.totalorder %s24, 1
      %p145 = por %p143, %p144
      %p147 = scmp.ne.s32.totalorder %s130, %s146
      %p148 = scmp.eq.s32.totalorder %s24, 0
      %p149 = por %p147, %p148
      %p150 = scmp.le.s32.totalorder 1, %s18
      %p151 = scmp.lt.s32.totalorder %s18, 3
      %p152 = pnand %p150, %p151
      %p153 = pneg %p152
      // Predicated region
      $region9: #{tpu_custom_call.1} parent=5 // pred_check
        _
      $region10: #{tpu_custom_call.1} parent=5 // pred_check_branch
        %155 = sbr.rel (%p152) target = $region12
      $region11: #{tpu_custom_call.1} parent=5 // pred_region
        %s156 = ssub.s32 %s18, 1
      $region12: #{tpu_custom_call.1} parent=5 // pred_fallthru
        _
      %p157 = scmp.lt.s32.totalorder %s18, 2
      // Predicated region
      $region13: #{tpu_custom_call.1} parent=5 // pred_check
        %p158 = pneg %p157
      $region14: #{tpu_custom_call.1} parent=5 // pred_check_branch
        %160 = sbr.rel (%p158) target = $region16
      $region15: #{tpu_custom_call.1} parent=5 // pred_region
        // Predicated region
        $region17: #{tpu_custom_call.1} parent=15 // pred_check
          %p161 = pneg %p52
        $region18: #{tpu_custom_call.1} parent=15 // pred_check_branch
          %163 = sbr.rel (%p161) target = $region20
        $region19: #{tpu_custom_call.1} parent=15 // pred_region
          %s164 = sand.u32 %s42, 1
          %s165 = scalar_lea.sflag [#allocation3], %s164
          %s166 = sand.u32 %s42, 1
          %s167 = smul.addr %s166, 16
          %s168 = scalar_lea.vmem [#allocation2], %s167
          %s169 = smul.u32 2, %s26
          %s171 = ssub.s32 256, 256
          %172 = vsyncadd %s165, %s171
          %s173 = smul.addr %s25, 2
          %s174 = sadd.s32 %s169, %s173
          %s175 = smul.addr %s174, 128
          %s176 = scalar_lea.hbm %s0, %s175
          %s178 = sshll.u32 %s168, 4
          %s179 = int_to_ptr.vmem [resolvable:$true] %s178
          %181 = dma.hbm_to_vmem [thread:$0]  %s176, 256, %s179, %s165
        $region20: #{tpu_custom_call.1} parent=15 // pred_fallthru
          _
        // Predicated region
        $region21: #{tpu_custom_call.1} parent=15 // pred_check
          %p182 = pneg %p80
        $region22: #{tpu_custom_call.1} parent=15 // pred_check_branch
          %184 = sbr.rel (%p182) target = $region24
        $region23: #{tpu_custom_call.1} parent=15 // pred_region
          %s185 = sand.u32 %s18, 1
          %s186 = scalar_lea.sflag [#allocation6], %s185
          %s187 = sand.u32 %s70, 1
          %s188 = smul.addr %s187, 32
          %s189 = scalar_lea.vmem [#allocation5], %s188
          %s190 = smul.u32 2, %s26
          %s192 = ssub.s32 512, 512
          %193 = vsyncadd %s186, %s192
          %s194 = smul.addr %s25, 4
          %s195 = sadd.s32 %s190, %s194
          %s196 = smul.addr %s195, 128
          %s197 = scalar_lea.hbm %s1, %s196
          %s198 = sshll.u32 %s189, 4
          %s199 = int_to_ptr.vmem [resolvable:$true] %s198
          %204 = dma.hbm_to_vmem [thread:$0]  %s197, 512, %s199, %s186, 256, 256, 16
        $region24: #{tpu_custom_call.1} parent=15 // pred_fallthru
          _
        // Predicated region
        $region25: #{tpu_custom_call.1} parent=15 // pred_check
          %p205 = pneg %p108
        $region26: #{tpu_custom_call.1} parent=15 // pred_check_branch
          %207 = sbr.rel (%p205) target = $region28
        $region27: #{tpu_custom_call.1} parent=15 // pred_region
          %s208 = sand.u32 %s18, 1
          %s209 = scalar_lea.sflag [#allocation6], %s208
          %s210 = sand.u32 %s98, 1
          %s211 = smul.addr %s210, 16
          %s212 = scalar_lea.vmem [#allocation7], %s211
          %s213 = smul.u32 2, %s26
          %s215 = ssub.s32 256, 256
          %216 = vsyncadd %s209, %s215
          %s217 = smul.addr %s25, 2
          %s218 = sadd.s32 %s213, %s217
          %s219 = smul.addr %s218, 128
          %s220 = scalar_lea.hbm %s2, %s219
          %s222 = sshll.u32 %s212, 4
          %s223 = int_to_ptr.vmem [resolvable:$true] %s222
          %225 = dma.hbm_to_vmem [thread:$0]  %s220, 256, %s223, %s209
        $region28: #{tpu_custom_call.1} parent=15 // pred_fallthru
          _
      $region16: #{tpu_custom_call.1} parent=5 // pred_fallthru
        _
      %p226 = scmp.le.s32.totalorder 1, %s18
      %p227 = scmp.lt.s32.totalorder %s18, 3
      %p228 = pnand %p226, %p227
      %p229 = pneg %p228
      // Predicated region
      $region29: #{tpu_custom_call.1} parent=5 // pred_check
        _
      $region30: #{tpu_custom_call.1} parent=5 // pred_check_branch
        %231 = sbr.rel (%p228) target = $region32
      $region31: #{tpu_custom_call.1} parent=5 // pred_region
        %s232 = ssub.s32 %s18, 1
        %s233 = sand.u32 %s45, 1
        %s234 = scalar_lea.sflag [#allocation3], %s233
        %s235 = sand.u32 %s45, 1
        %s236 = smul.addr %s235, 16
        %s237 = scalar_lea.vmem [#allocation2], %s236
        // Predicated region
        $region33: #{tpu_custom_call.1} parent=31 // pred_check
          %p238 = pneg %p58
        $region34: #{tpu_custom_call.1} parent=31 // pred_check_branch
          %240 = sbr.rel (%p238) target = $region36
        $region35: #{tpu_custom_call.1} parent=31 // pred_region
          %241 = dma.done %s234, 256
        $region36: #{tpu_custom_call.1} parent=31 // pred_fallthru
          _
        %s242 = sand.u32 %s23, 1
        %s243 = scalar_lea.sflag [#allocation6], %s242
        %s244 = sand.u32 %s73, 1
        %s245 = smul.addr %s244, 32
        %s246 = scalar_lea.vmem [#allocation5], %s245
        // Predicated region
        $region37: #{tpu_custom_call.1} parent=31 // pred_check
          %p247 = pneg %p86
        $region38: #{tpu_custom_call.1} parent=31 // pred_check_branch
          %249 = sbr.rel (%p247) target = $region40
        $region39: #{tpu_custom_call.1} parent=31 // pred_region
          %250 = dma.done %s243, 512
        $region40: #{tpu_custom_call.1} parent=31 // pred_fallthru
          _
        %s251 = sand.u32 %s23, 1
        %s252 = scalar_lea.sflag [#allocation6], %s251
        %s253 = sand.u32 %s101, 1
        %s254 = smul.addr %s253, 16
        %s255 = scalar_lea.vmem [#allocation7], %s254
        // Predicated region
        $region41: #{tpu_custom_call.1} parent=31 // pred_check
          %p256 = pneg %p114
        $region42: #{tpu_custom_call.1} parent=31 // pred_check_branch
          %258 = sbr.rel (%p256) target = $region44
        $region43: #{tpu_custom_call.1} parent=31 // pred_region
          %259 = dma.done %s252, 256
        $region44: #{tpu_custom_call.1} parent=31 // pred_fallthru
          _
        %s260 = sand.u32 %s45, 1
        %s261 = scalar_lea.sflag [#allocation3], %s260
        %s262 = sand.u32 %s45, 1
        %s263 = smul.addr %s262, 16
        %s264 = scalar_lea.vmem [#allocation2], %s263
        %p265 = pneg %p58
        %p266 = pneg %p55
        %s267 = sand.u32 %s23, 1
        %s268 = scalar_lea.sflag [#allocation6], %s267
        %s269 = sand.u32 %s73, 1
        %s270 = smul.addr %s269, 32
        %s271 = scalar_lea.vmem [#allocation5], %s270
        %p272 = pneg %p86
        %p273 = pneg %p83
        %s274 = sand.u32 %s23, 1
        %s275 = scalar_lea.sflag [#allocation6], %s274
        %s276 = sand.u32 %s101, 1
        %s277 = smul.addr %s276, 16
        %s278 = scalar_lea.vmem [#allocation7], %s277
        %p279 = pneg %p114
        %p280 = pneg %p111
        %p281 = pneg %p142
        %p282 = pneg %p139
        %s283 = sand.u32 %s129, 1
        %s284 = scalar_lea.sflag [#allocation4], %s283
        %s285 = sand.u32 %s129, 1
        %s286 = smul.addr %s285, 64
        %s287 = scalar_lea.vmem [#allocation8], %s286
        %s288 = smul.u32 2, %s28
        %s289 = smul.u32 2, %s28
        %s290 = smul.u32 2, %s28
        %s291 = smul.u32 2, %s28
        %v292 = vld [vmem:[%s237] sm:$0xff]
        %v293 = vld [vmem:[%s237 + $0x8] sm:$0xff]
        %294 = vst [vmem:[%s287] sm:$0xff] %v292
        %295 = vst [vmem:[%s287 + $0x8] sm:$0xff] %v293
        %v296 = vld [vmem:[%s246] sm:$0xff]
        %v297 = vld [vmem:[%s246 + $0x8] sm:$0xff]
        %v298 = vld [vmem:[%s246 + $0x10] sm:$0xff]
        %v299 = vld [vmem:[%s246 + $0x18] sm:$0xff]
        %300 = vst [vmem:[%s287 + $0x10] sm:$0xff] %v296
        %301 = vst [vmem:[%s287 + $0x18] sm:$0xff] %v297
        %302 = vst [vmem:[%s287 + $0x20] sm:$0xff] %v298
        %303 = vst [vmem:[%s287 + $0x28] sm:$0xff] %v299
        %v304 = vld [vmem:[%s255] sm:$0xff]
        %v305 = vld [vmem:[%s255 + $0x8] sm:$0xff]
        %306 = vst [vmem:[%s287 + $0x30] sm:$0xff] %v304
        %307 = vst [vmem:[%s287 + $0x38] sm:$0xff] %v305
        %s308 = sand.u32 %s129, 1
        %s309 = scalar_lea.sflag [#allocation4], %s308
        %s310 = sand.u32 %s129, 1
        %s311 = smul.addr %s310, 64
        %s312 = scalar_lea.vmem [#allocation8], %s311
        // Predicated region
        $region45: #{tpu_custom_call.1} parent=31 // pred_check
          %p313 = pneg %p139
        $region46: #{tpu_custom_call.1} parent=31 // pred_check_branch
          %315 = sbr.rel (%p313) target = $region48
        $region47: #{tpu_custom_call.1} parent=31 // pred_region
          %s316 = smul.u32 2, %s28
          %s318 = ssub.s32 1024, 1024
          %319 = vsyncadd %s309, %s318
          %s320 = smul.addr %s27, 8
          %s321 = sadd.s32 %s316, %s320
          %s322 = smul.addr %s321, 128
          %s323 = scalar_lea.hbm %s3, %s322
          %s324 = sshll.u32 %s312, 4
          %s325 = int_to_ptr.vmem [resolvable:$true] %s324
          %330 = dma.vmem_to_hbm [thread:$0]  %s325, 1024, %s323, %s309, 256, 256, 16
        $region48: #{tpu_custom_call.1} parent=31 // pred_fallthru
          _
      $region32: #{tpu_custom_call.1} parent=5 // pred_fallthru
        _
      %p331 = scmp.le.s32.totalorder 2, %s18
      // Predicated region
      $region49: #{tpu_custom_call.1} parent=5 // pred_check
        %p332 = pneg %p331
      $region50: #{tpu_custom_call.1} parent=5 // pred_check_branch
        %334 = sbr.rel (%p332) target = $region52
      $region51: #{tpu_custom_call.1} parent=5 // pred_region
        %s335 = ssub.s32 %s18, 2
        // Predicated region
        $region53: #{tpu_custom_call.1} parent=51 // pred_check
          %p336 = pneg %p145
        $region54: #{tpu_custom_call.1} parent=51 // pred_check_branch
          %338 = sbr.rel (%p336) target = $region56
        $region55: #{tpu_custom_call.1} parent=51 // pred_region
          %s339 = sand.u32 %s130, 1
          %s340 = scalar_lea.sflag [#allocation4], %s339
          %s341 = sand.u32 %s130, 1
          %s342 = smul.addr %s341, 64
          %s343 = scalar_lea.vmem [#allocation8], %s342
          %344 = dma.done %s340, 1024
        $region56: #{tpu_custom_call.1} parent=51 // pred_fallthru
          _
      $region52: #{tpu_custom_call.1} parent=5 // pred_fallthru
        _
    $region6: #{tpu_custom_call.1} parent=1 // loop_footer
      %s22 = sadd.s32 1, %s18
    $region7: #{tpu_custom_call.1} parent=1 // loop_footer_branch
      %17 = sbr.rel target = $region3
    $region8: #{tpu_custom_call.1} parent=1 // loop_exit
      _
    %345 = vsyncpa [#allocation3], 1
    %s346 = scalar_lea.sflag [#allocation3], 1
    %347 = vsyncpa %s346, 1
    %348 = vsyncpa [#allocation6], 1
    %s349 = scalar_lea.sflag [#allocation6], 1
    %350 = vsyncpa %s349, 1
    %351 = vsyncpa [#allocation4], 1
    %s352 = scalar_lea.sflag [#allocation4], 1
    %353 = vsyncpa %s352, 1

</llo_original>
